<compile_context>
chip_gen: v6e
topology: v6e:2x2x1
jax: 0.10.0
libtpu: 0.0.40
codegen_flags: <defaults>
</compile_context>

<pallas_src>
import functools

import jax
import jax.numpy as jnp
from jax.experimental import pallas as pl
from jax.experimental.pallas import tpu as pltpu


# GELU (tanh approximation) constants, hoisted to trace time.
# NOTE: the reference module uses a custom GELU() class (definition not shown);
# the tanh approximation is the usual definition in such codebases.  If the
# reference uses the exact erf form, swap in jax.nn.gelu(x, approximate=False).
_SQRT_2_OVER_PI = 0.7978845608028654
_GELU_COEF = 0.044715


def _gelu_tanh(x):
    return 0.5 * x * (1.0 + jnp.tanh(_SQRT_2_OVER_PI * (x + _GELU_COEF * x * x * x)))


def tree_conv_kernel(state_ref, adj_ref, w_ref, b_ref, out_ref, *,
                     kernel_size, b_blk):
    # state_ref: (b_blk, N, D)       adj_ref: (b_blk, N, N)
    # w_ref:     (K*D, D_pad)        b_ref:   (1, D_pad)     (f32)
    # out_ref:   (b_blk, N, D_pad)   (f32, lane-dense store)
    w = w_ref[...]        # fused per-tap weights, loaded once per grid step
    bias = b_ref[...]     # (1, D_pad), broadcasts over rows (f32)
    compute_dtype = state_ref.dtype

    for bb in range(b_blk):               # static, small batch block
        a = adj_ref[bb]                   # (N, N)
        s = state_ref[bb]                 # (N, D)  = S_0
        pieces = [s]
        for _ in range(1, kernel_size):
            # Chain A^j @ state: accumulate in f32 on the MXU, round back to
            # the compute dtype so the next matmul stays on the fast path.
            s = jnp.dot(a, s, preferred_element_type=jnp.float32)
            s = s.astype(compute_dtype)
            pieces.append(s)

        # Fuse the K weight taps into one contraction of size K*D.
        feat = pieces[0] if kernel_size == 1 else jnp.concatenate(pieces, axis=-1)
        acc = jnp.dot(feat, w, preferred_element_type=jnp.float32)   # (N, D_pad)
        acc = acc + bias                                             # f32
        out_ref[bb] = _gelu_tanh(acc).astype(out_ref.dtype)


def tree_conv(state, adj, w_stack, bias, *, compute_dtype=None, b_blk=None,
              lane_multiple=128):
    """TreeConv forward.

    state:   (B, N, D) node features
    adj:     (B, N, N) adjacency
    w_stack: (K, D, D) with w_stack[j] = conv_weight[:, :, 0, j].T
    bias:    (1, D)
    Returns  (B, N, D) float32.
    """
    B, N, D = state.shape
    K = w_stack.shape[0]
    out_dtype = jnp.float32

    if compute_dtype is None:
        compute_dtype = state.dtype
    compute_dtype = jnp.dtype(compute_dtype)

    # Lane-dense output: pad output feature dim up to a 128 multiple.
    D_pad = ((D + lane_multiple - 1) // lane_multiple) * lane_multiple

    # Fuse the K per-tap weight matrices into a single (K*D, D_pad) matrix so
    # the kernel does one contraction over K*D instead of K tiny ones.
    w_fused = w_stack.reshape(K * D, D)
    w_fused = jnp.pad(w_fused, ((0, 0), (0, D_pad - D)))
    bias_pad = jnp.pad(bias.reshape(1, D), ((0, 0), (0, D_pad - D)))
    bias_pad = bias_pad.astype(jnp.float32)

    state_c = state.astype(compute_dtype)
    adj_c = adj.astype(compute_dtype)
    w_c = w_fused.astype(compute_dtype)

    # Batch blocking: amortize per-grid-step overhead while keeping >= 2 grid
    # steps when possible (two v7x TensorCores shard the parallel axis).
    if b_blk is None:
        b_blk = max(1, B // 2)
        while B % b_blk != 0:
            b_blk -= 1
    assert B % b_blk == 0, "b_blk must divide B"
    grid = (B // b_blk,)

    # Explicit VMEM budget from the actual block footprint (double-buffered
    # inputs/outputs + resident weights), clamped to v7x's 64 MiB physical.
    isz = compute_dtype.itemsize
    blk_bytes = b_blk * N * (D * isz + N * isz + D_pad * 4)
    w_bytes = K * D * D_pad * isz + D_pad * 4
    vmem_limit = int(min(64 * 1024 * 1024,
                         max(4 * 1024 * 1024, 2 * blk_bytes + w_bytes + (1 << 20))))

    # TODO(synk): for large N (adjacency block no longer VMEM-resident, esp. on
    # v7x's 64 MiB VMEM), add a row-tile grid axis over N with the A^j chain
    # intermediates kept in a persistent VMEM scratch to keep HBM traffic at
    # O(N^2 + N*D) per batch.

    kernel = functools.partial(tree_conv_kernel, kernel_size=K, b_blk=b_blk)
    out_pad = pl.pallas_call(
        kernel,
        out_shape=jax.ShapeDtypeStruct((B, N, D_pad), out_dtype),
        grid_spec=pltpu.PrefetchScalarGridSpec(
            num_scalar_prefetch=0,
            grid=grid,
            in_specs=[
                pl.BlockSpec((b_blk, N, D), lambda i: (i, 0, 0)),
                pl.BlockSpec((b_blk, N, N), lambda i: (i, 0, 0)),
                pl.BlockSpec((K * D, D_pad), lambda i: (0, 0)),
                pl.BlockSpec((1, D_pad), lambda i: (0, 0)),
            ],
            out_specs=pl.BlockSpec((b_blk, N, D_pad), lambda i: (i, 0, 0)),
        ),
        compiler_params=pltpu.CompilerParams(
            dimension_semantics=("parallel",),
            vmem_limit_bytes=vmem_limit),
    )(state_c, adj_c, w_c, bias_pad)

    # Slice away the zero-padded lanes (done once, outside the kernel).
    return out_pad[..., :D]


def tree_conv_reference(state, adj, w_stack, bias):
    # Pure-JAX f32 reference of the same math, for correctness checks.
    K = w_stack.shape[0]
    s = state
    acc = jnp.einsum("bnd,de->bne", s, w_stack[0])
    for j in range(1, K):
        s = jnp.einsum("bnm,bmd->bnd", adj, s)
        acc = acc + jnp.einsum("bnd,de->bne", s, w_stack[j])
    acc = acc + bias.reshape(1, 1, -1)
    return _gelu_tanh(acc)


if __name__ == "__main__":
    # Small shapes consistent with the module's forward:
    #   batch B=2, nodes/seq N=8, dmodel D=32, conv kernel K=3.
    B, N, D, K = 2, 8, 32, 3

    key = jax.random.PRNGKey(0)
    k_state, k_adj, k_w, k_b = jax.random.split(key, 4)

    state = jax.random.normal(k_state, (B, N, D), dtype=jnp.float32)
    # small-magnitude adjacency so repeated matmuls stay well-scaled
    adj = jax.random.uniform(k_adj, (B, N, N), dtype=jnp.float32) / N

    # Conv2d(D, D, (1, K)) parameters: conv_weight (out=D, in=D, 1, K).
    fan_in = D * K
    bound = 1.0 / jnp.sqrt(fan_in)
    conv_weight = jax.random.uniform(
        k_w, (D, D, 1, K), dtype=jnp.float32, minval=-bound, maxval=bound)
    conv_bias = jax.random.uniform(
        k_b, (D,), dtype=jnp.float32, minval=-bound, maxval=bound)

    # Pre-transpose into a (K, D_in, D_out) stack: w_stack[j] = W[:, :, 0, j].T
    w_stack = jnp.transpose(conv_weight[:, :, 0, :], (2, 1, 0))
    bias = conv_bias.reshape(1, D)

    ref = tree_conv_reference(state, adj, w_stack, bias)

    # f32 path (bit-accurate vs reference within f32 tolerances).
    out = jax.block_until_ready(tree_conv(state, adj, w_stack, bias))
    assert out.shape == (B, N, D)
    assert jnp.allclose(out, ref, atol=1e-5, rtol=1e-5), "f32 mismatch vs reference"

    # bf16 compute path (v6e/v7x fast path): bf16 operands, f32 accumulation.
    out_bf16 = jax.block_until_ready(
        tree_conv(state, adj, w_stack, bias, compute_dtype=jnp.bfloat16))
    assert out_bf16.shape == (B, N, D)
    assert jnp.allclose(out_bf16, ref, atol=5e-2, rtol=5e-2), "bf16 mismatch vs reference"

    print("KERNEL_OK")
</pallas_src>

<mosaic_0001>
module attributes {stable_mosaic.version = 11 : i64} {
  func.func @tree_conv_kernel(%arg0: i32, %arg1: memref<1x8x32xf32, #tpu.memory_space<vmem>>, %arg2: memref<1x8x8xf32, #tpu.memory_space<vmem>>, %arg3: memref<96x128xf32, #tpu.memory_space<vmem>>, %arg4: memref<1x128xf32, #tpu.memory_space<vmem>>, %arg5: memref<1x8x128xf32, #tpu.memory_space<vmem>>) attributes {dimension_semantics = [#tpu.dimension_semantics<parallel>], iteration_bounds = array<i64: 2>, scalar_prefetch = 0 : i64, scratch_operands = 0 : i64, tpu.core_type = #tpu.core_type<tc>, window_params = [{transform_indices = @transform_0, window_bounds = array<i64: 1, 8, 32>}, {transform_indices = @transform_1, window_bounds = array<i64: 1, 8, 8>}, {pipeline_mode = #tpu.pipeline_mode<synchronous>, transform_indices = @transform_2, window_bounds = array<i64: 96, 128>}, {pipeline_mode = #tpu.pipeline_mode<synchronous>, transform_indices = @transform_3, window_bounds = array<i64: 1, 128>}, {transform_indices = @transform_4, window_bounds = array<i64: 1, 8, 128>}]} {
    %c0 = arith.constant 0 : index
    %c0_0 = arith.constant 0 : index
    %0 = vector.load %arg3[%c0, %c0_0] : memref<96x128xf32, #tpu.memory_space<vmem>>, vector<96x128xf32>
    %c0_1 = arith.constant 0 : index
    %c0_2 = arith.constant 0 : index
    %1 = vector.load %arg4[%c0_1, %c0_2] : memref<1x128xf32, #tpu.memory_space<vmem>>, vector<1x128xf32>
    %c0_3 = arith.constant 0 : index
    %c0_4 = arith.constant 0 : index
    %c0_5 = arith.constant 0 : index
    %2 = vector.load %arg2[%c0_3, %c0_4, %c0_5] : memref<1x8x8xf32, #tpu.memory_space<vmem>>, vector<1x8x8xf32>
    %3 = vector.shape_cast %2 : vector<1x8x8xf32> to vector<8x8xf32>
    %c0_6 = arith.constant 0 : index
    %c0_7 = arith.constant 0 : index
    %c0_8 = arith.constant 0 : index
    %4 = vector.load %arg1[%c0_6, %c0_7, %c0_8] : memref<1x8x32xf32, #tpu.memory_space<vmem>>, vector<1x8x32xf32>
    %5 = vector.shape_cast %4 : vector<1x8x32xf32> to vector<8x32xf32>
    %cst = arith.constant dense<0.000000e+00> : vector<8x32xf32>
    %6 = tpu.matmul %3, %5, %cst {dimension_numbers = #tpu.dot_dimension_numbers<[1], [0], [0], [1], [0, 0, 1, 1], [], []>} : vector<8x8xf32>, vector<8x32xf32>, vector<8x32xf32> -> vector<8x32xf32>
    %cst_9 = arith.constant dense<0.000000e+00> : vector<8x32xf32>
    %7 = tpu.matmul %3, %6, %cst_9 {dimension_numbers = #tpu.dot_dimension_numbers<[1], [0], [0], [1], [0, 0, 1, 1], [], []>} : vector<8x8xf32>, vector<8x32xf32>, vector<8x32xf32> -> vector<8x32xf32>
    %8 = tpu.concatenate %5, %6, %7 in 1 : vector<8x32xf32>, vector<8x32xf32>, vector<8x32xf32> -> vector<8x96xf32>
    %cst_10 = arith.constant dense<0.000000e+00> : vector<8x128xf32>
    %9 = tpu.matmul %8, %0, %cst_10 {dimension_numbers = #tpu.dot_dimension_numbers<[1], [0], [0], [1], [0, 0, 1, 1], [], []>} : vector<8x96xf32>, vector<96x128xf32>, vector<8x128xf32> -> vector<8x128xf32>
    %10 = vector.broadcast %1 : vector<1x128xf32> to vector<8x128xf32>
    %11 = arith.addf %9, %10 : vector<8x128xf32>
    %cst_11 = arith.constant 5.000000e-01 : f32
    %12 = vector.broadcast %cst_11 : f32 to vector<8x128xf32>
    %13 = arith.mulf %12, %11 : vector<8x128xf32>
    %cst_12 = arith.constant 4.471500e-02 : f32
    %14 = vector.broadcast %cst_12 : f32 to vector<8x128xf32>
    %15 = arith.mulf %14, %11 : vector<8x128xf32>
    %16 = arith.mulf %15, %11 : vector<8x128xf32>
    %17 = arith.mulf %16, %11 : vector<8x128xf32>
    %18 = arith.addf %11, %17 : vector<8x128xf32>
    %cst_13 = arith.constant 0.797884583 : f32
    %19 = vector.broadcast %cst_13 : f32 to vector<8x128xf32>
    %20 = arith.mulf %19, %18 : vector<8x128xf32>
    %21 = math.tanh %20 : vector<8x128xf32>
    %cst_14 = arith.constant 1.000000e+00 : f32
    %22 = vector.broadcast %cst_14 : f32 to vector<8x128xf32>
    %23 = arith.addf %22, %21 : vector<8x128xf32>
    %24 = arith.mulf %13, %23 : vector<8x128xf32>
    %c0_15 = arith.constant 0 : index
    %c0_16 = arith.constant 0 : index
    %c0_17 = arith.constant 0 : index
    %25 = vector.load %arg5[%c0_15, %c0_16, %c0_17] : memref<1x8x128xf32, #tpu.memory_space<vmem>>, vector<1x8x128xf32>
    %26 = vector.shape_cast %25 : vector<1x8x128xf32> to vector<8x128xf32>
    %27 = vector.shape_cast %24 : vector<8x128xf32> to vector<1x8x128xf32>
    tpu.vector_store %arg5[%c0_15, %c0_16, %c0_17], %27 {strides = array<i32>} : memref<1x8x128xf32, #tpu.memory_space<vmem>>, vector<1x8x128xf32>,
    return
  }
  func.func @transform_0(%arg0: i32) -> (i32, i32, i32) {
    %c0_i32 = arith.constant 0 : i32
    %c0_i32_0 = arith.constant 0 : i32
    %c0_i32_1 = arith.constant 0 : i32
    return %arg0, %c0_i32, %c0_i32_0 : i32, i32, i32
  }
  func.func @transform_1(%arg0: i32) -> (i32, i32, i32) {
    %c0_i32 = arith.constant 0 : i32
    %c0_i32_0 = arith.constant 0 : i32
    %c0_i32_1 = arith.constant 0 : i32
    return %arg0, %c0_i32, %c0_i32_0 : i32, i32, i32
  }
  func.func @transform_2(%arg0: i32) -> (i32, i32) {
    %c0_i32 = arith.constant 0 : i32
    %c0_i32_0 = arith.constant 0 : i32
    %c0_i32_1 = arith.constant 0 : i32
    return %c0_i32, %c0_i32_0 : i32, i32
  }
  func.func @transform_3(%arg0: i32) -> (i32, i32) {
    %c0_i32 = arith.constant 0 : i32
    %c0_i32_0 = arith.constant 0 : i32
    %c0_i32_1 = arith.constant 0 : i32
    return %c0_i32, %c0_i32_0 : i32, i32
  }
  func.func @transform_4(%arg0: i32) -> (i32, i32, i32) {
    %c0_i32 = arith.constant 0 : i32
    %c0_i32_0 = arith.constant 0 : i32
    %c0_i32_1 = arith.constant 0 : i32
    return %arg0, %c0_i32, %c0_i32_0 : i32, i32, i32
  }
}

</mosaic_0001>

<llo_original>
// kernel: tpu_custom_call.1
$region0: #{tpu_custom_call.1}
  #allocation0 [shape = 'u32[]', space=smem, size = 0x4, offset = 0x4, fixed_abs, tag = 'smem constant byte address 0x4 - core index']
  #allocation1 [shape = 'u32[144,128]{1,0:T(1,128)}', space=vmem, size = 0x12000, scoped, tag = 'internal scratch']
  %s0 = inlined_call_operand.hbm [shape: f32[2,8,32], index: 0, kind: input, shape index: {}]
  %s1 = inlined_call_operand.hbm [shape: f32[2,8,8], index: 1, kind: input, shape index: {}]
  %s2 = inlined_call_operand.hbm [shape: f32[96,128], index: 2, kind: input, shape index: {}]
  %s3 = inlined_call_operand.vmem [shape: f32[1,128], index: 3, kind: input, shape index: {}]
  %s4 = inlined_call_operand.hbm [shape: f32[2,8,128], index: 4, kind: output, shape index: {}]
  %s5 = sld [smem:[#allocation0]]
  $region61: #{tpu_custom_call.1} parent=0
    _
  %s7 = ssub.s32 1, %s5
  %s8 = scalar_select 0, %s7, %s5
  $region1: #{tpu_custom_call.1} parent=0
    #allocation2 [shape = 'u8[8192]{0}', space=vmem, size = 0x2000, scoped, tag = 'input window, operand 0']
    #allocation3 [shape = 's32[2]{0}', space=sflag, size = 0x8, scoped, tag = 'scoped memory for tpu_custom_call.1']
    #allocation4 [shape = 's32[2]{0}', space=sflag, size = 0x8, scoped, tag = 'scoped memory for tpu_custom_call.1']
    #allocation5 [shape = 'u8[8192]{0}', space=vmem, size = 0x2000, scoped, tag = 'input window, operand 1']
    #allocation6 [shape = 's32[2]{0}', space=sflag, size = 0x8, scoped, tag = 'scoped memory for tpu_custom_call.1']
    #allocation7 [shape = 'u8[49152]{0}', space=vmem, size = 0xc000, scoped, tag = 'input window, operand 2, single buffered']
    #allocation8 [shape = 'u8[8192]{0}', space=vmem, size = 0x2000, scoped, tag = 'output window, operand 0']
    %9 = vsyncpa [#allocation3], 0
    %s10 = scalar_lea.sflag [#allocation3], 1
    %11 = vsyncpa %s10, 0
    %12 = vsyncpa [#allocation6], 0
    %s13 = scalar_lea.sflag [#allocation6], 1
    %14 = vsyncpa %s13, 0
    %15 = vsyncpa [#allocation4], 0
    %s16 = scalar_lea.sflag [#allocation4], 1
    %17 = vsyncpa %s16, 0
    loop: start=0, step=1, limit=4
    $region2: #{tpu_custom_call.1} parent=1 // loop_pre_header
      _
    $region3: #{tpu_custom_call.1} parent=1 // loop_header
      %s19 = sphi 0, %s23
      %p20 = scmp.ge.s32.totalorder %s19, 4
      %s29 = sphi 0, %s31
      %s32 = sphi 0, %s29
      %s33 = sphi 0, %s32
      %s49 = sphi 0, %s33
      %s55 = sphi 0, %s57
      %s58 = sphi 0, %s55
      %s59 = sphi 0, %s58
      %s75 = sphi 0, %s59
      %s79 = sphi 0, %s79
      %s81 = sphi 0, %s79
      %s82 = sphi 0, %s81
      %s96 = sphi 0, %s82
      %s100 = sphi 0, %s100
      %s102 = sphi 0, %s100
      %s103 = sphi 0, %s102
      %s117 = sphi 0, %s103
      %s123 = sphi 0, %s125
      %s126 = sphi 0, %s123
      %s127 = sphi 0, %s126
      %s143 = sphi 0, %s127
    $region4: #{tpu_custom_call.1} parent=1 // loop_header_branch
      %22 = sbr.rel (%p20) target = $region8
    $region5: #{tpu_custom_call.1} parent=1 // loop_body
      %s24 = ssub.s32 %s19, 1
      %s25 = ssub.s32 %s19, 2
      %s26 = sadd.s32 %s19, 1
      %s27 = ssub.s32 %s19, %s26
      %p28 = scmp.eq.s32.totalorder %s27, 0
      %s30 = sadd.s32 %s29, 1
      %s31 = scalar_select %p28, %s29, %s30
      %p34 = pneg %p28
      %p35 = scmp.eq.s32.totalorder %s19, 1
      %p36 = por %p34, %p35
      %p37 = scmp.ne.s32.totalorder %s29, %s32
      %p38 = scmp.eq.s32.totalorder %s19, 0
      %p39 = por %p37, %p38
      %p40 = scmp.ne.s32.totalorder %s29, %s32
      %p41 = scmp.eq.s32.totalorder %s24, 1
      %p42 = por %p40, %p41
      %p43 = scmp.ne.s32.totalorder %s32, %s33
      %p44 = scmp.eq.s32.totalorder %s24, 0
      %p45 = por %p43, %p44
      %p46 = scmp.ne.s32.totalorder %s32, %s33
      %p47 = scmp.eq.s32.totalorder %s25, 1
      %p48 = por %p46, %p47
      %p50 = scmp.ne.s32.totalorder %s33, %s49
      %p51 = scmp.eq.s32.totalorder %s25, 0
      %p52 = por %p50, %p51
      %s53 = ssub.s32 %s19, %s26
      %p54 = scmp.eq.s32.totalorder %s53, 0
      %s56 = sadd.s32 %s55, 1
      %s57 = scalar_select %p54, %s55, %s56
      %p60 = pneg %p54
      %p61 = scmp.eq.s32.totalorder %s19, 1
      %p62 = por %p60, %p61
      %p63 = scmp.ne.s32.totalorder %s55, %s58
      %p64 = scmp.eq.s32.totalorder %s19, 0
      %p65 = por %p63, %p64
      %p66 = scmp.ne.s32.totalorder %s55, %s58
      %p67 = scmp.eq.s32.totalorder %s24, 1
      %p68 = por %p66, %p67
      %p69 = scmp.ne.s32.totalorder %s58, %s59
      %p70 = scmp.eq.s32.totalorder %s24, 0
      %p71 = por %p69, %p70
      %p72 = scmp.ne.s32.totalorder %s58, %s59
      %p73 = scmp.eq.s32.totalorder %s25, 1
      %p74 = por %p72, %p73
      %p76 = scmp.ne.s32.totalorder %s59, %s75
      %p77 = scmp.eq.s32.totalorder %s25, 0
      %p78 = por %p76, %p77
      %s80 = sadd.s32 %s79, 1
      %p83 = scmp.eq.s32.totalorder %s19, 1
      %p84 = scmp.ne.s32.totalorder %s79, %s81
      %p85 = scmp.eq.s32.totalorder %s19, 0
      %p86 = por %p84, %p85
      %p87 = scmp.ne.s32.totalorder %s79, %s81
      %p88 = scmp.eq.s32.totalorder %s24, 1
      %p89 = por %p87, %p88
      %p90 = scmp.ne.s32.totalorder %s81, %s82
      %p91 = scmp.eq.s32.totalorder %s24, 0
      %p92 = por %p90, %p91
      %p93 = scmp.ne.s32.totalorder %s81, %s82
      %p94 = scmp.eq.s32.totalorder %s25, 1
      %p95 = por %p93, %p94
      %p97 = scmp.ne.s32.totalorder %s82, %s96
      %p98 = scmp.eq.s32.totalorder %s25, 0
      %p99 = por %p97, %p98
      %s101 = sadd.s32 %s100, 1
      %p104 = scmp.eq.s32.totalorder %s19, 1
      %p105 = scmp.ne.s32.totalorder %s100, %s102
      %p106 = scmp.eq.s32.totalorder %s19, 0
      %p107 = por %p105, %p106
      %p108 = scmp.ne.s32.totalorder %s100, %s102
      %p109 = scmp.eq.s32.totalorder %s24, 1
      %p110 = por %p108, %p109
      %p111 = scmp.ne.s32.totalorder %s102, %s103
      %p112 = scmp.eq.s32.totalorder %s24, 0
      %p113 = por %p111, %p112
      %p114 = scmp.ne.s32.totalorder %s102, %s103
      %p115 = scmp.eq.s32.totalorder %s25, 1
      %p116 = por %p114, %p115
      %p118 = scmp.ne.s32.totalorder %s103, %s117
      %p119 = scmp.eq.s32.totalorder %s25, 0
      %p120 = por %p118, %p119
      %s121 = ssub.s32 %s19, %s26
      %p122 = scmp.eq.s32.totalorder %s121, 0
      %s124 = sadd.s32 %s123, 1
      %s125 = scalar_select %p122, %s123, %s124
      %p128 = pneg %p122
      %p129 = scmp.eq.s32.totalorder %s19, 1
      %p130 = por %p128, %p129
      %p131 = scmp.ne.s32.totalorder %s123, %s126
      %p132 = scmp.eq.s32.totalorder %s19, 0
      %p133 = por %p131, %p132
      %p134 = scmp.ne.s32.totalorder %s123, %s126
      %p135 = scmp.eq.s32.totalorder %s24, 1
      %p136 = por %p134, %p135
      %p137 = scmp.ne.s32.totalorder %s126, %s127
      %p138 = scmp.eq.s32.totalorder %s24, 0
      %p139 = por %p137, %p138
      %p140 = scmp.ne.s32.totalorder %s126, %s127
      %p141 = scmp.eq.s32.totalorder %s25, 1
      %p142 = por %p140, %p141
      %p144 = scmp.ne.s32.totalorder %s127, %s143
      %p145 = scmp.eq.s32.totalorder %s25, 0
      %p146 = por %p144, %p145
      %p147 = scmp.le.s32.totalorder 1, %s19
      %p148 = scmp.lt.s32.totalorder %s19, 3
      %p149 = pnand %p147, %p148
      %p150 = pneg %p149
      // Predicated region
      $region9: #{tpu_custom_call.1} parent=5 // pred_check
        _
      $region10: #{tpu_custom_call.1} parent=5 // pred_check_branch
        %152 = sbr.rel (%p149) target = $region12
      $region11: #{tpu_custom_call.1} parent=5 // pred_region
        %s153 = ssub.s32 %s19, 1
        // Predicated region
        $region13: #{tpu_custom_call.1} parent=11 // pred_check
          %p154 = pneg %p92
        $region14: #{tpu_custom_call.1} parent=11 // pred_check_branch
          %156 = sbr.rel (%p154) target = $region16
        $region15: #{tpu_custom_call.1} parent=11 // pred_region
          %s158 = ssub.s32 1536, 1536
          %159 = vsyncadd [#allocation6], %s158
          %s160 = sshll.u32 [#allocation7], 4
          %s161 = int_to_ptr.vmem [resolvable:$true] %s160
          %166 = dma.hbm_to_vmem [thread:$0]  %s2, 1536, %s161, [#allocation6], 128, 128, 8
        $region16: #{tpu_custom_call.1} parent=11 // pred_fallthru
          _
        // Predicated region
        $region17: #{tpu_custom_call.1} parent=11 // pred_check
          %p167 = pneg %p113
        $region18: #{tpu_custom_call.1} parent=11 // pred_check_branch
          %169 = sbr.rel (%p167) target = $region20
        $region19: #{tpu_custom_call.1} parent=11 // pred_region
          _
        $region20: #{tpu_custom_call.1} parent=11 // pred_fallthru
          _
      $region12: #{tpu_custom_call.1} parent=5 // pred_fallthru
        _
      %p170 = scmp.lt.s32.totalorder %s19, 2
      // Predicated region
      $region21: #{tpu_custom_call.1} parent=5 // pred_check
        %p171 = pneg %p170
      $region22: #{tpu_custom_call.1} parent=5 // pred_check_branch
        %173 = sbr.rel (%p171) target = $region24
      $region23: #{tpu_custom_call.1} parent=5 // pred_region
        // Predicated region
        $region25: #{tpu_custom_call.1} parent=23 // pred_check
          %p174 = pneg %p39
        $region26: #{tpu_custom_call.1} parent=23 // pred_check_branch
          %176 = sbr.rel (%p174) target = $region28
        $region27: #{tpu_custom_call.1} parent=23 // pred_region
          %s177 = sand.u32 %s29, 1
          %s178 = scalar_lea.sflag [#allocation3], %s177
          %s179 = sand.u32 %s29, 1
          %s180 = smul.addr %s179, 8
          %s181 = scalar_lea.vmem [#allocation2], %s180
          %s183 = ssub.s32 128, 128
          %184 = vsyncadd %s178, %s183
          %s185 = smul.addr %s19, 128
          %s186 = scalar_lea.hbm %s0, %s185
          %s188 = sshll.u32 %s181, 4
          %s189 = int_to_ptr.vmem [resolvable:$true] %s188
          %191 = dma.hbm_to_vmem [thread:$0]  %s186, 128, %s189, %s178
        $region28: #{tpu_custom_call.1} parent=23 // pred_fallthru
          _
        // Predicated region
        $region29: #{tpu_custom_call.1} parent=23 // pred_check
          %p192 = pneg %p65
        $region30: #{tpu_custom_call.1} parent=23 // pred_check_branch
          %194 = sbr.rel (%p192) target = $region32
        $region31: #{tpu_custom_call.1} parent=23 // pred_region
          %s195 = sand.u32 %s19, 1
          %s196 = scalar_lea.sflag [#allocation6], %s195
          %s197 = sand.u32 %s55, 1
          %s198 = smul.addr %s197, 8
          %s199 = scalar_lea.vmem [#allocation5], %s198
          %s201 = ssub.s32 128, 128
          %202 = vsyncadd %s196, %s201
          %s203 = smul.addr %s19, 128
          %s204 = scalar_lea.hbm %s1, %s203
          %s206 = sshll.u32 %s199, 4
          %s207 = int_to_ptr.vmem [resolvable:$true] %s206
          %209 = dma.hbm_to_vmem [thread:$0]  %s204, 128, %s207, %s196
        $region32: #{tpu_custom_call.1} parent=23 // pred_fallthru
          _
      $region24: #{tpu_custom_call.1} parent=5 // pred_fallthru
        _
      %p210 = scmp.le.s32.totalorder 1, %s19
      %p211 = scmp.lt.s32.totalorder %s19, 3
      %p212 = pnand %p210, %p211
      %p213 = pneg %p212
      // Predicated region
      $region33: #{tpu_custom_call.1} parent=5 // pred_check
        _
      $region34: #{tpu_custom_call.1} parent=5 // pred_check_branch
        %215 = sbr.rel (%p212) target = $region36
      $region35: #{tpu_custom_call.1} parent=5 // pred_region
        %s216 = ssub.s32 %s19, 1
        %s217 = sand.u32 %s32, 1
        %s218 = scalar_lea.sflag [#allocation3], %s217
        %s219 = sand.u32 %s32, 1
        %s220 = smul.addr %s219, 8
        %s221 = scalar_lea.vmem [#allocation2], %s220
        // Predicated region
        $region37: #{tpu_custom_call.1} parent=35 // pred_check
          %p222 = pneg %p45
        $region38: #{tpu_custom_call.1} parent=35 // pred_check_branch
          %224 = sbr.rel (%p222) target = $region40
        $region39: #{tpu_custom_call.1} parent=35 // pred_region
          %225 = dma.done %s218, 128
        $region40: #{tpu_custom_call.1} parent=35 // pred_fallthru
          _
        %s226 = sand.u32 %s24, 1
        %s227 = scalar_lea.sflag [#allocation6], %s226
        %s228 = sand.u32 %s58, 1
        %s229 = smul.addr %s228, 8
        %s230 = scalar_lea.vmem [#allocation5], %s229
        // Predicated region
        $region41: #{tpu_custom_call.1} parent=35 // pred_check
          %p231 = pneg %p71
        $region42: #{tpu_custom_call.1} parent=35 // pred_check_branch
          %233 = sbr.rel (%p231) target = $region44
        $region43: #{tpu_custom_call.1} parent=35 // pred_region
          %234 = dma.done %s227, 128
        $region44: #{tpu_custom_call.1} parent=35 // pred_fallthru
          _
        // Predicated region
        $region45: #{tpu_custom_call.1} parent=35 // pred_check
          %p235 = pneg %p92
        $region46: #{tpu_custom_call.1} parent=35 // pred_check_branch
          %237 = sbr.rel (%p235) target = $region48
        $region47: #{tpu_custom_call.1} parent=35 // pred_region
          %238 = dma.done [#allocation6], 1536
        $region48: #{tpu_custom_call.1} parent=35 // pred_fallthru
          _
        %s239 = sand.u32 %s32, 1
        %s240 = scalar_lea.sflag [#allocation3], %s239
        %s241 = sand.u32 %s32, 1
        %s242 = smul.addr %s241, 8
        %s243 = scalar_lea.vmem [#allocation2], %s242
        %p244 = pneg %p45
        %p245 = pneg %p42
        %s246 = sand.u32 %s24, 1
        %s247 = scalar_lea.sflag [#allocation6], %s246
        %s248 = sand.u32 %s58, 1
        %s249 = smul.addr %s248, 8
        %s250 = scalar_lea.vmem [#allocation5], %s249
        %p251 = pneg %p71
        %p252 = pneg %p68
        %p253 = pneg %p92
        %p254 = pneg %p89
        %p255 = pneg %p113
        %p256 = pneg %p110
        %p257 = pneg %p139
        %p258 = pneg %p136
        %s259 = sand.u32 %s126, 1
        %s260 = scalar_lea.sflag [#allocation4], %s259
        %s261 = sand.u32 %s126, 1
        %s262 = smul.addr %s261, 8
        %s263 = scalar_lea.vmem [#allocation8], %s262
        %v264 = vld [vmem:[#allocation7] sm:$0xff]
        %v265 = vld [vmem:[#allocation7 + $0x8] sm:$0xff]
        %v266 = vld [vmem:[#allocation7 + $0x10] sm:$0xff]
        %v267 = vld [vmem:[#allocation7 + $0x18] sm:$0xff]
        %v268 = vld [vmem:[#allocation7 + $0x20] sm:$0xff]
        %v269 = vld [vmem:[#allocation7 + $0x28] sm:$0xff]
        %v270 = vld [vmem:[#allocation7 + $0x30] sm:$0xff]
        %v271 = vld [vmem:[#allocation7 + $0x38] sm:$0xff]
        %v272 = vld [vmem:[#allocation7 + $0x40] sm:$0xff]
        %v273 = vld [vmem:[#allocation7 + $0x48] sm:$0xff]
        %v274 = vld [vmem:[#allocation7 + $0x50] sm:$0xff]
        %v275 = vld [vmem:[#allocation7 + $0x58] sm:$0xff]
        %v276 = vld [vmem:[%s3] sm:$0x1]
        %v277 = vld [vmem:[%s230] sm:$0xff]
        %v278 = vld [vmem:[%s221] sm:$0xff]
        %vm279 = vcmask 64512
        %v281 = vsel %vm279, %v277, 0
        %283 = vmatprep.subr.mxu0 0.0
        %284 = vmatpush1.msra.mxu0 0.0
        %285 = vmatprep.subr.mxu0 0.0
        %286 = vmatpush1.msra.mxu0 0.0
        %287 = vmatprep.subr.mxu0 0.0
        %288 = vmatpush1.msra.mxu0 0.0
        %289 = vmatprep.subr.mxu0 0.0
        %290 = vmatpush1.msra.mxu0 0.0
        %291 = vmatprep.subr.mxu0 0.0
        %292 = vmatpush1.msra.mxu0 0.0
        %293 = vmatprep.subr.mxu0 0.0
        %294 = vmatpush1.msra.mxu0 0.0
        %295 = vmatprep.subr.mxu0 0.0
        %296 = vmatpush1.msra.mxu0 0.0
        %297 = vmatprep.subr.mxu0 0.0
        %298 = vmatpush1.msra.mxu0 0.0
        %299 = vmatprep.subr.mxu0 0.0
        %300 = vmatpush1.msra.mxu0 0.0
        %301 = vmatprep.subr.mxu0 0.0
        %302 = vmatpush1.msra.mxu0 0.0
        %303 = vmatprep.subr.mxu0 0.0
        %304 = vmatpush1.msra.mxu0 0.0
        %305 = vmatprep.subr.mxu0 0.0
        %306 = vmatpush1.msra.mxu0 0.0
        %307 = vmatprep.subr.mxu0 0.0
        %308 = vmatpush1.msra.mxu0 0.0
        %309 = vmatprep.subr.mxu0 0.0
        %310 = vmatpush1.msra.mxu0 0.0
        %311 = vmatprep.subr.mxu0 0.0
        %312 = vmatpush1.msra.mxu0 0.0
        %313 = vmatprep.subr.mxu0 0.0
        %314 = vmatpush1.msra.mxu0 %v278
        %315 = vmatprep.subr.mxu0 0.0
        %316 = vmatpush2.msra.mxu0 0.0
        %317 = vmatprep.subr.mxu0 0.0
        %318 = vmatpush2.msra.mxu0 0.0
        %319 = vmatprep.subr.mxu0 0.0
        %320 = vmatpush2.msra.mxu0 0.0
        %321 = vmatprep.subr.mxu0 0.0
        %322 = vmatpush2.msra.mxu0 0.0
        %323 = vmatprep.subr.mxu0 0.0
        %324 = vmatpush2.msra.mxu0 0.0
        %325 = vmatprep.subr.mxu0 0.0
        %326 = vmatpush2.msra.mxu0 0.0
        %327 = vmatprep.subr.mxu0 0.0
        %328 = vmatpush2.msra.mxu0 0.0
        %329 = vmatprep.subr.mxu0 0.0
        %330 = vmatpush2.msra.mxu0 0.0
        %331 = vmatprep.subr.mxu0 0.0
        %332 = vmatpush2.msra.mxu0 0.0
        %333 = vmatprep.subr.mxu0 0.0
        %334 = vmatpush2.msra.mxu0 0.0
        %335 = vmatprep.subr.mxu0 0.0
        %336 = vmatpush2.msra.mxu0 0.0
        %337 = vmatprep.subr.mxu0 0.0
        %338 = vmatpush2.msra.mxu0 0.0
        %339 = vmatprep.subr.mxu0 0.0
        %340 = vmatpush2.msra.mxu0 0.0
        %341 = vmatprep.subr.mxu0 0.0
        %342 = vmatpush2.msra.mxu0 0.0
        %343 = vmatprep.subr.mxu0 0.0
        %344 = vmatpush2.msra.mxu0 0.0
        %345 = vmatprep.subr.mxu0 0.0
        %346 = vmatpush2.msra.mxu0 0.0
        %347 = vmatprep.mubr.f32.mxu0 0.0
        %348 = vmatmul.mubr.f32.gmra.mxu0 %v281
        %v349 = vpop.f32.mrf.mxu0
        %v350 = vadd.f32 0.0, %v349
        %v351 = vpop.f32.mrf.mxu0
        %352 = vdwg.mxu0
        %353 = vmatprep.subr.mxu0 0.0
        %354 = vmatpush1.msra.mxu0 0.0
        %355 = vmatprep.subr.mxu0 0.0
        %356 = vmatpush1.msra.mxu0 0.0
        %357 = vmatprep.subr.mxu0 0.0
        %358 = vmatpush1.msra.mxu0 0.0
        %359 = vmatprep.subr.mxu0 0.0
        %360 = vmatpush1.msra.mxu0 0.0
        %361 = vmatprep.subr.mxu0 0.0
        %362 = vmatpush1.msra.mxu0 0.0
        %363 = vmatprep.subr.mxu0 0.0
        %364 = vmatpush1.msra.mxu0 0.0
        %365 = vmatprep.subr.mxu0 0.0
        %366 = vmatpush1.msra.mxu0 0.0
        %367 = vmatprep.subr.mxu0 0.0
        %368 = vmatpush1.msra.mxu0 0.0
        %369 = vmatprep.subr.mxu0 0.0
        %370 = vmatpush1.msra.mxu0 0.0
        %371 = vmatprep.subr.mxu0 0.0
        %372 = vmatpush1.msra.mxu0 0.0
        %373 = vmatprep.subr.mxu0 0.0
        %374 = vmatpush1.msra.mxu0 0.0
        %375 = vmatprep.subr.mxu0 0.0
        %376 = vmatpush1.msra.mxu0 0.0
        %377 = vmatprep.subr.mxu0 0.0
        %378 = vmatpush1.msra.mxu0 0.0
        %379 = vmatprep.subr.mxu0 0.0
        %380 = vmatpush1.msra.mxu0 0.0
        %381 = vmatprep.subr.mxu0 0.0
        %382 = vmatpush1.msra.mxu0 0.0
        %383 = vmatprep.subr.mxu0 0.0
        %384 = vmatpush1.msra.mxu0 %v350
        %385 = vmatprep.subr.mxu0 0.0
        %386 = vmatpush2.msra.mxu0 0.0
        %387 = vmatprep.subr.mxu0 0.0
        %388 = vmatpush2.msra.mxu0 0.0
        %389 = vmatprep.subr.mxu0 0.0
        %390 = vmatpush2.msra.mxu0 0.0
        %391 = vmatprep.subr.mxu0 0.0
        %392 = vmatpush2.msra.mxu0 0.0
        %393 = vmatprep.subr.mxu0 0.0
        %394 = vmatpush2.msra.mxu0 0.0
        %395 = vmatprep.subr.mxu0 0.0
        %396 = vmatpush2.msra.mxu0 0.0
        %397 = vmatprep.subr.mxu0 0.0
        %398 = vmatpush2.msra.mxu0 0.0
        %399 = vmatprep.subr.mxu0 0.0
        %400 = vmatpush2.msra.mxu0 0.0
        %401 = vmatprep.subr.mxu0 0.0
        %402 = vmatpush2.msra.mxu0 0.0
        %403 = vmatprep.subr.mxu0 0.0
        %404 = vmatpush2.msra.mxu0 0.0
        %405 = vmatprep.subr.mxu0 0.0
        %406 = vmatpush2.msra.mxu0 0.0
        %407 = vmatprep.subr.mxu0 0.0
        %408 = vmatpush2.msra.mxu0 0.0
        %409 = vmatprep.subr.mxu0 0.0
        %410 = vmatpush2.msra.mxu0 0.0
        %411 = vmatprep.subr.mxu0 0.0
        %412 = vmatpush2.msra.mxu0 0.0
        %413 = vmatprep.subr.mxu0 0.0
        %414 = vmatpush2.msra.mxu0 0.0
        %415 = vmatprep.subr.mxu0 0.0
        %416 = vmatpush2.msra.mxu0 0.0
        %417 = vmatprep.mubr.f32.mxu0 0.0
        %418 = vmatmul.mubr.f32.gmra.mxu0 %v281
        %v419 = vpop.f32.mrf.mxu0
        %v420 = vadd.f32 0.0, %v419
        %v421 = vpop.f32.mrf.mxu0
        %422 = vdwg.mxu0
        %424 = vrot.lane.b32.xlu0 %v350, 32
        %v425 = vpop.permute.xlu0 %424
        %428 = vrot.lane.b32.xlu0 %v420, 64
        %v429 = vpop.permute.xlu0 %428
        %vm431 = vcmask 261120
        %v432 = vsel %vm431, %v278, %v425
        %vm433 = vcmask 523264
        %v434 = vsel %vm433, %v432, %v429
        %v436 = vlaneseq
        %v437 = vshrl.u32 %v436, 7
        %v438 = vsub.s32 0, %v437
        %v439 = vrot.slane %v276, %v438
        %vm441 = vcmask 785408
        %v443 = vsel %vm441, %v434, 0
        %445 = vmatprep.subr.mxu0 0.0
        %446 = vmatpush1.msra.mxu0 0.0
        %447 = vmatprep.subr.mxu0 0.0
        %448 = vmatpush1.msra.mxu0 0.0
        %449 = vmatprep.subr.mxu0 0.0
        %450 = vmatpush1.msra.mxu0 0.0
        %451 = vmatprep.subr.mxu0 0.0
        %452 = vmatpush1.msra.mxu0 0.0
        %453 = vmatprep.subr.mxu0 0.0
        %454 = vmatpush1.msra.mxu0 %v275
        %455 = vmatprep.subr.mxu0 0.0
        %456 = vmatpush1.msra.mxu0 %v274
        %457 = vmatprep.subr.mxu0 0.0
        %458 = vmatpush1.msra.mxu0 %v273
        %459 = vmatprep.subr.mxu0 0.0
        %460 = vmatpush1.msra.mxu0 %v272
        %461 = vmatprep.subr.mxu0 0.0
        %462 = vmatpush1.msra.mxu0 %v271
        %463 = vmatprep.subr.mxu0 0.0
        %464 = vmatpush1.msra.mxu0 %v270
        %465 = vmatprep.subr.mxu0 0.0
        %466 = vmatpush1.msra.mxu0 %v269
        %467 = vmatprep.subr.mxu0 0.0
        %468 = vmatpush1.msra.mxu0 %v268
        %469 = vmatprep.subr.mxu0 0.0
        %470 = vmatpush1.msra.mxu0 %v267
        %471 = vmatprep.subr.mxu0 0.0
        %472 = vmatpush1.msra.mxu0 %v266
        %473 = vmatprep.subr.mxu0 0.0
        %474 = vmatpush1.msra.mxu0 %v265
        %475 = vmatprep.subr.mxu0 0.0
        %476 = vmatpush1.msra.mxu0 %v264
        %477 = vmatprep.subr.mxu0 0.0
        %478 = vmatpush2.msra.mxu0 0.0
        %479 = vmatprep.subr.mxu0 0.0
        %480 = vmatpush2.msra.mxu0 0.0
        %481 = vmatprep.subr.mxu0 0.0
        %482 = vmatpush2.msra.mxu0 0.0
        %483 = vmatprep.subr.mxu0 0.0
        %484 = vmatpush2.msra.mxu0 0.0
        %485 = vmatprep.subr.mxu0 0.0
        %486 = vmatpush2.msra.mxu0 0.0
        %487 = vmatprep.subr.mxu0 0.0
        %488 = vmatpush2.msra.mxu0 0.0
        %489 = vmatprep.subr.mxu0 0.0
        %490 = vmatpush2.msra.mxu0 0.0
        %491 = vmatprep.subr.mxu0 0.0
        %492 = vmatpush2.msra.mxu0 0.0
        %493 = vmatprep.subr.mxu0 0.0
        %494 = vmatpush2.msra.mxu0 0.0
        %495 = vmatprep.subr.mxu0 0.0
        %496 = vmatpush2.msra.mxu0 0.0
        %497 = vmatprep.subr.mxu0 0.0
        %498 = vmatpush2.msra.mxu0 0.0
        %499 = vmatprep.subr.mxu0 0.0
        %500 = vmatpush2.msra.mxu0 0.0
        %501 = vmatprep.subr.mxu0 0.0
        %502 = vmatpush2.msra.mxu0 0.0
        %503 = vmatprep.subr.mxu0 0.0
        %504 = vmatpush2.msra.mxu0 0.0
        %505 = vmatprep.subr.mxu0 0.0
        %506 = vmatpush2.msra.mxu0 0.0
        %507 = vmatprep.subr.mxu0 0.0
        %508 = vmatpush2.msra.mxu0 0.0
        %509 = vmatprep.mubr.f32.mxu0 0.0
        %510 = vmatmul.mubr.f32.gmra.mxu0 %v443
        %v511 = vpop.f32.mrf.mxu0
        %v512 = vadd.f32 %v439, %v511
        %v513 = vpop.f32.mrf.mxu0
        %514 = vdwg.mxu0
        %v515 = vmul.f32 %v512, 0.5
        %v516 = vmul.f32 %v512, 0.044715
        %v517 = vmul.f32 %v516, %v512
        %v518 = vmul.f32 %v517, %v512
        %v519 = vadd.f32 %v512, %v518
        %v520 = vmul.f32 %v519, 0.7978846
        %v521 = vtanh.pop %v520
        %v522 = vadd.f32 %v521, 1.0
        %v523 = vmul.f32 %v515, %v522
        %524 = vst [vmem:[%s263] sm:$0xff] %v523
        %s525 = sand.u32 %s126, 1
        %s526 = scalar_lea.sflag [#allocation4], %s525
        %s527 = sand.u32 %s126, 1
        %s528 = smul.addr %s527, 8
        %s529 = scalar_lea.vmem [#allocation8], %s528
        // Predicated region
        $region49: #{tpu_custom_call.1} parent=35 // pred_check
          %p530 = pneg %p136
        $region50: #{tpu_custom_call.1} parent=35 // pred_check_branch
          %532 = sbr.rel (%p530) target = $region52
        $region51: #{tpu_custom_call.1} parent=35 // pred_region
          %s534 = ssub.s32 128, 128
          %535 = vsyncadd %s526, %s534
          %s536 = smul.addr %s24, 128
          %s537 = scalar_lea.hbm %s4, %s536
          %s539 = sshll.u32 %s529, 4
          %s540 = int_to_ptr.vmem [resolvable:$true] %s539
          %542 = dma.vmem_to_hbm [thread:$0]  %s540, 128, %s537, %s526
        $region52: #{tpu_custom_call.1} parent=35 // pred_fallthru
          _
      $region36: #{tpu_custom_call.1} parent=5 // pred_fallthru
        _
      %p543 = scmp.le.s32.totalorder 2, %s19
      // Predicated region
      $region53: #{tpu_custom_call.1} parent=5 // pred_check
        %p544 = pneg %p543
      $region54: #{tpu_custom_call.1} parent=5 // pred_check_branch
        %546 = sbr.rel (%p544) target = $region56
      $region55: #{tpu_custom_call.1} parent=5 // pred_region
        %s547 = ssub.s32 %s19, 2
        // Predicated region
        $region57: #{tpu_custom_call.1} parent=55 // pred_check
          %p548 = pneg %p142
        $region58: #{tpu_custom_call.1} parent=55 // pred_check_branch
          %550 = sbr.rel (%p548) target = $region60
        $region59: #{tpu_custom_call.1} parent=55 // pred_region
          %s551 = sand.u32 %s127, 1
          %s552 = scalar_lea.sflag [#allocation4], %s551
          %s553 = sand.u32 %s127, 1
          %s554 = smul.addr %s553, 8
          %s555 = scalar_lea.vmem [#allocation8], %s554
          %556 = dma.done %s552, 128
        $region60: #{tpu_custom_call.1} parent=55 // pred_fallthru
          _
      $region56: #{tpu_custom_call.1} parent=5 // pred_fallthru
        _
    $region6: #{tpu_custom_call.1} parent=1 // loop_footer
      %s23 = sadd.s32 1, %s19
    $region7: #{tpu_custom_call.1} parent=1 // loop_footer_branch
      %18 = sbr.rel target = $region3
    $region8: #{tpu_custom_call.1} parent=1 // loop_exit
      _
    %557 = vsyncpa [#allocation3], 1
    %s558 = scalar_lea.sflag [#allocation3], 1
    %559 = vsyncpa %s558, 1
    %560 = vsyncpa [#allocation6], 1
    %s561 = scalar_lea.sflag [#allocation6], 1
    %562 = vsyncpa %s561, 1
    %563 = vsyncpa [#allocation4], 1
    %s564 = scalar_lea.sflag [#allocation4], 1
    %565 = vsyncpa %s564, 1

</llo_original>
